<compile_context>
chip_gen: v5e
topology: v5e:2x2
jax: 0.10.0
libtpu: 0.0.40
codegen_flags: <defaults>
</compile_context>

<pallas_src>
import math

import jax
import jax.numpy as jnp
from jax import lax
from jax.experimental import pallas as pl
from jax.experimental.pallas import tpu as pltpu

_INV_SQRT2 = 1.0 / math.sqrt(2.0)


def _make_fusion_kernel(n_inputs):
    """Kernel over refs: x_0..x_{n-1}, w_0..w_{n-1}, bias, out."""

    def kernel(*refs):
        x_refs = refs[:n_inputs]
        w_refs = refs[n_inputs:2 * n_inputs]
        b_ref = refs[2 * n_inputs]
        o_ref = refs[2 * n_inputs + 1]

        # Accumulating MXU dots, f32 accumulation.  Weights are already
        # transposed (and block-diagonal when rows are lane-packed), so there
        # is no concat and no per-iteration transpose.
        y = jnp.dot(x_refs[0][...], w_refs[0][...],
                    preferred_element_type=jnp.float32)
        for x_ref, w_ref in zip(x_refs[1:], w_refs[1:]):
            y = y + jnp.dot(x_ref[...], w_ref[...],
                            preferred_element_type=jnp.float32)
        y = y + b_ref[...].astype(jnp.float32)

        # Exact GeLU: 0.5 * y * (1 + erf(y / sqrt(2)))  (F.gelu default).
        out = 0.5 * y * (1.0 + lax.erf(y * jnp.float32(_INV_SQRT2)))
        o_ref[...] = out.astype(o_ref.dtype)

    return kernel


def _round_up(x, m):
    return ((x + m - 1) // m) * m


def fusion_forward(xs, weight, bias, *, tm=1024):
    """Pallas implementation of Fusion.forward.

    xs:     sequence of arrays, each (..., feat_i); features concatenated
            along the last dim must equal input_size == weight.shape[1].
    weight: (hidden_size, input_size)  (PyTorch nn.Linear layout)
    bias:   (hidden_size,)
    tm:     row tile (rows of the flattened leading dims) per grid step.
    """
    xs = list(xs)
    n_in = len(xs)
    assert n_in >= 1
    lead_shape = xs[0].shape[:-1]
    for x in xs[1:]:
        assert x.shape[:-1] == lead_shape, "fused inputs must share leading dims"
    feats = [int(x.shape[-1]) for x in xs]
    K = sum(feats)
    N = int(weight.shape[0])
    assert int(weight.shape[1]) == K

    out_dtype = xs[0].dtype
    M = 1
    for d in lead_shape:
        M *= int(d)

    # Row-packing factor g: pack g rows per lane-row so the output lane width
    # (g*N) is a multiple of 128 -> dense stores.  Only when the resulting
    # block-diagonal weights stay small; otherwise fall back to g=1.
    if N < 128 and 128 % N == 0 and all((128 // N) * f <= 4096 for f in feats):
        g = 128 // N
    else:
        g = 1

    # Row tile: multiple of 8*g (so packed blocks keep 8-sublane alignment),
    # capped near the actual row count for small problems.
    align = 8 * g
    tm_rows = max(align, _round_up(min(tm, M), align))
    Mp = _round_up(M, tm_rows)          # zero-pad ragged row counts
    grid = (Mp // tm_rows,)

    # Flatten leading dims, pad rows, then pack g rows per lane-row.
    # Row-major reshapes here are free layout plumbing at the JAX level.
    xs_flat = []
    for x, f in zip(xs, feats):
        xf = x.reshape(M, f)
        if Mp != M:
            xf = jnp.pad(xf, ((0, Mp - M), (0, 0)))
        xs_flat.append(xf.reshape(Mp // g, g * f))

    # Split the Linear weight per fused input and transpose once.  For packed
    # rows, kron(I_g, W_i^T) keeps the g packed rows independent while letting
    # the kernel emit a single lane-dense (rows/g, g*N) output tile.
    w_packed = []
    eye_g = jnp.eye(g, dtype=weight.dtype)
    off = 0
    for f in feats:
        wt = weight[:, off:off + f].T                      # (f, N)
        off += f
        w_packed.append(jnp.kron(eye_g, wt) if g > 1 else wt)   # (g*f, g*N)
    b_packed = jnp.tile(bias, g).reshape(1, g * N)

    in_specs = []
    for f in feats:  # activation row tiles (pipelined / double-buffered)
        in_specs.append(pl.BlockSpec((tm_rows // g, g * f), lambda i: (i, 0)))
    for f in feats:  # weights: constant index_map -> VMEM-resident
        in_specs.append(pl.BlockSpec((g * f, g * N), lambda i: (0, 0)))
    in_specs.append(pl.BlockSpec((1, g * N), lambda i: (0, 0)))  # bias

    out_flat = pl.pallas_call(
        _make_fusion_kernel(n_in),
        out_shape=jax.ShapeDtypeStruct((Mp // g, g * N), out_dtype),
        grid_spec=pltpu.PrefetchScalarGridSpec(
            num_scalar_prefetch=0,
            grid=grid,
            in_specs=in_specs,
            out_specs=pl.BlockSpec((tm_rows // g, g * N), lambda i: (i, 0)),
        ),
        compiler_params=pltpu.CompilerParams(
            dimension_semantics=("parallel",)),
    )(*xs_flat, *w_packed, b_packed)

    # Unpack lane-packed rows, drop padding, restore leading dims (all free).
    out = out_flat.reshape(Mp, N)[:M]
    return out.reshape(*lead_shape, N)


def fusion_reference(xs, weight, bias):
    x = jnp.concatenate(xs, axis=-1)
    y = x @ weight.T + bias
    return jax.nn.gelu(y, approximate=False)


if __name__ == "__main__":
    key = jax.random.PRNGKey(0)
    k0, k1, kw, kb = jax.random.split(key, 4)

    # Small shapes consistent with the module: two (batch, seq, feat) inputs
    # fused along the last dim; Linear(input_size=32, hidden_size=32).
    batch, seq = 2, 8
    f0, f1 = 16, 16
    input_size = f0 + f1
    hidden_size = 32

    x0 = jax.random.normal(k0, (batch, seq, f0), dtype=jnp.float32)
    x1 = jax.random.normal(k1, (batch, seq, f1), dtype=jnp.float32)

    # Deterministic nn.Linear-style init: U(-1/sqrt(in), 1/sqrt(in)).
    bound = 1.0 / math.sqrt(input_size)
    weight = jax.random.uniform(kw, (hidden_size, input_size),
                                minval=-bound, maxval=bound, dtype=jnp.float32)
    bias = jax.random.uniform(kb, (hidden_size,),
                              minval=-bound, maxval=bound, dtype=jnp.float32)

    out = fusion_forward([x0, x1], weight, bias)
    out = jax.block_until_ready(out)

    ref = fusion_reference([x0, x1], weight, bias)
    assert out.shape == (batch, seq, hidden_size)
    assert jnp.allclose(out, ref, atol=1e-5, rtol=1e-5)

    print("KERNEL_OK")
</pallas_src>

<mosaic_0001>
module attributes {stable_mosaic.version = 11 : i64} {
  func.func @kernel(%arg0: i32, %arg1: memref<8x64xf32, #tpu.memory_space<vmem>>, %arg2: memref<8x64xf32, #tpu.memory_space<vmem>>, %arg3: memref<64x128xf32, #tpu.memory_space<vmem>>, %arg4: memref<64x128xf32, #tpu.memory_space<vmem>>, %arg5: memref<1x128xf32, #tpu.memory_space<vmem>>, %arg6: memref<8x128xf32, #tpu.memory_space<vmem>>) attributes {dimension_semantics = [#tpu.dimension_semantics<parallel>], iteration_bounds = array<i64: 1>, scalar_prefetch = 0 : i64, scratch_operands = 0 : i64, tpu.core_type = #tpu.core_type<tc>, window_params = [{transform_indices = @transform_0, window_bounds = array<i64: 8, 64>}, {transform_indices = @transform_1, window_bounds = array<i64: 8, 64>}, {pipeline_mode = #tpu.pipeline_mode<synchronous>, transform_indices = @transform_2, window_bounds = array<i64: 64, 128>}, {pipeline_mode = #tpu.pipeline_mode<synchronous>, transform_indices = @transform_3, window_bounds = array<i64: 64, 128>}, {pipeline_mode = #tpu.pipeline_mode<synchronous>, transform_indices = @transform_4, window_bounds = array<i64: 1, 128>}, {transform_indices = @transform_5, window_bounds = array<i64: 8, 128>}]} {
    %c0 = arith.constant 0 : index
    %c0_0 = arith.constant 0 : index
    %0 = vector.load %arg1[%c0, %c0_0] : memref<8x64xf32, #tpu.memory_space<vmem>>, vector<8x64xf32>
    %c0_1 = arith.constant 0 : index
    %c0_2 = arith.constant 0 : index
    %1 = vector.load %arg3[%c0_1, %c0_2] : memref<64x128xf32, #tpu.memory_space<vmem>>, vector<64x128xf32>
    %cst = arith.constant dense<0.000000e+00> : vector<8x128xf32>
    %2 = tpu.matmul %0, %1, %cst {dimension_numbers = #tpu.dot_dimension_numbers<[1], [0], [0], [1], [0, 0, 1, 1], [], []>} : vector<8x64xf32>, vector<64x128xf32>, vector<8x128xf32> -> vector<8x128xf32>
    %c0_3 = arith.constant 0 : index
    %c0_4 = arith.constant 0 : index
    %3 = vector.load %arg2[%c0_3, %c0_4] : memref<8x64xf32, #tpu.memory_space<vmem>>, vector<8x64xf32>
    %c0_5 = arith.constant 0 : index
    %c0_6 = arith.constant 0 : index
    %4 = vector.load %arg4[%c0_5, %c0_6] : memref<64x128xf32, #tpu.memory_space<vmem>>, vector<64x128xf32>
    %cst_7 = arith.constant dense<0.000000e+00> : vector<8x128xf32>
    %5 = tpu.matmul %3, %4, %cst_7 {dimension_numbers = #tpu.dot_dimension_numbers<[1], [0], [0], [1], [0, 0, 1, 1], [], []>} : vector<8x64xf32>, vector<64x128xf32>, vector<8x128xf32> -> vector<8x128xf32>
    %6 = arith.addf %2, %5 : vector<8x128xf32>
    %c0_8 = arith.constant 0 : index
    %c0_9 = arith.constant 0 : index
    %7 = vector.load %arg5[%c0_8, %c0_9] : memref<1x128xf32, #tpu.memory_space<vmem>>, vector<1x128xf32>
    %8 = vector.broadcast %7 : vector<1x128xf32> to vector<8x128xf32>
    %9 = arith.addf %6, %8 : vector<8x128xf32>
    %cst_10 = arith.constant 5.000000e-01 : f32
    %10 = vector.broadcast %cst_10 : f32 to vector<8x128xf32>
    %11 = arith.mulf %10, %9 : vector<8x128xf32>
    %cst_11 = arith.constant 0.707106769 : f32
    %12 = vector.broadcast %cst_11 : f32 to vector<8x128xf32>
    %13 = arith.mulf %9, %12 : vector<8x128xf32>
    %14 = math.erf %13 : vector<8x128xf32>
    %cst_12 = arith.constant 1.000000e+00 : f32
    %15 = vector.broadcast %cst_12 : f32 to vector<8x128xf32>
    %16 = arith.addf %15, %14 : vector<8x128xf32>
    %17 = arith.mulf %11, %16 : vector<8x128xf32>
    %c0_13 = arith.constant 0 : index
    %c0_14 = arith.constant 0 : index
    %18 = vector.load %arg6[%c0_13, %c0_14] : memref<8x128xf32, #tpu.memory_space<vmem>>, vector<8x128xf32>
    tpu.vector_store %arg6[%c0_13, %c0_14], %17 {strides = array<i32>} : memref<8x128xf32, #tpu.memory_space<vmem>>, vector<8x128xf32>,
    return
  }
  func.func @transform_0(%arg0: i32) -> (i32, i32) {
    %c0_i32 = arith.constant 0 : i32
    %c0_i32_0 = arith.constant 0 : i32
    return %arg0, %c0_i32 : i32, i32
  }
  func.func @transform_1(%arg0: i32) -> (i32, i32) {
    %c0_i32 = arith.constant 0 : i32
    %c0_i32_0 = arith.constant 0 : i32
    return %arg0, %c0_i32 : i32, i32
  }
  func.func @transform_2(%arg0: i32) -> (i32, i32) {
    %c0_i32 = arith.constant 0 : i32
    %c0_i32_0 = arith.constant 0 : i32
    %c0_i32_1 = arith.constant 0 : i32
    return %c0_i32, %c0_i32_0 : i32, i32
  }
  func.func @transform_3(%arg0: i32) -> (i32, i32) {
    %c0_i32 = arith.constant 0 : i32
    %c0_i32_0 = arith.constant 0 : i32
    %c0_i32_1 = arith.constant 0 : i32
    return %c0_i32, %c0_i32_0 : i32, i32
  }
  func.func @transform_4(%arg0: i32) -> (i32, i32) {
    %c0_i32 = arith.constant 0 : i32
    %c0_i32_0 = arith.constant 0 : i32
    %c0_i32_1 = arith.constant 0 : i32
    return %c0_i32, %c0_i32_0 : i32, i32
  }
  func.func @transform_5(%arg0: i32) -> (i32, i32) {
    %c0_i32 = arith.constant 0 : i32
    %c0_i32_0 = arith.constant 0 : i32
    return %arg0, %c0_i32 : i32, i32
  }
}

</mosaic_0001>

<llo_original>
// kernel: tpu_custom_call.1
$region0: #{tpu_custom_call.1}
  #allocation0 [shape = 'u32[]', space=smem, size = 0x4, offset = 0x4, fixed_abs, tag = 'smem constant byte address 0x4 - core index']
  #allocation1 [shape = 'u32[72,128]{1,0:T(1,128)}', space=vmem, size = 0x9000, scoped, tag = 'internal scratch']
  %s0 = inlined_call_operand.hbm [shape: f32[8,64], index: 0, kind: input, shape index: {}]
  %s1 = inlined_call_operand.hbm [shape: f32[8,64], index: 1, kind: input, shape index: {}]
  %s2 = inlined_call_operand.hbm [shape: f32[64,128], index: 2, kind: input, shape index: {}]
  %s3 = inlined_call_operand.hbm [shape: f32[64,128], index: 3, kind: input, shape index: {}]
  %s4 = inlined_call_operand.vmem [shape: f32[1,128], index: 4, kind: input, shape index: {}]
  %s5 = inlined_call_operand.hbm [shape: f32[8,128], index: 5, kind: output, shape index: {}]
  %s6 = sld [smem:[#allocation0]]
  $region46: #{tpu_custom_call.1} parent=0
    _
  %s8 = ssub.s32 1, %s6
  %s9 = scalar_select 0, %s8, %s6
  $region1: #{tpu_custom_call.1} parent=0
    #allocation2 [shape = 'u8[4096]{0}', space=vmem, size = 0x1000, scoped, tag = 'input window, operand 0, single buffered']
    #allocation3 [shape = 's32[1]{0}', space=sflag, size = 0x4, scoped, tag = 'scoped memory for tpu_custom_call.1']
    #allocation4 [shape = 's32[1]{0}', space=sflag, size = 0x4, scoped, tag = 'scoped memory for tpu_custom_call.1']
    #allocation5 [shape = 'u8[4096]{0}', space=vmem, size = 0x1000, scoped, tag = 'input window, operand 1, single buffered']
    #allocation6 [shape = 's32[1]{0}', space=sflag, size = 0x4, scoped, tag = 'scoped memory for tpu_custom_call.1']
    #allocation7 [shape = 'u8[32768]{0}', space=vmem, size = 0x8000, scoped, tag = 'input window, operand 2, single buffered']
    #allocation8 [shape = 'u8[32768]{0}', space=vmem, size = 0x8000, scoped, tag = 'input window, operand 3, single buffered']
    #allocation9 [shape = 's32[1]{0}', space=sflag, size = 0x4, scoped, tag = 'scoped memory for tpu_custom_call.1']
    #allocation10 [shape = 'u8[4096]{0}', space=vmem, size = 0x1000, scoped, tag = 'output window, operand 0, single buffered']
    %10 = vsyncpa [#allocation3], 0
    %11 = vsyncpa [#allocation6], 0
    %12 = vsyncpa [#allocation9], 0
    %13 = vsyncpa [#allocation4], 0
    // Predicated region
    $region2: #{tpu_custom_call.1} parent=1 // pred_check
      _
    $region3: #{tpu_custom_call.1} parent=1 // pred_check_branch
      %15 = sbr.rel (0) target = $region5
    $region4: #{tpu_custom_call.1} parent=1 // pred_region
      %17 = vsyncadd [#allocation3], 0
      %s19 = sshll.u32 %s0, 4
      %s20 = int_to_ptr.hbm [resolvable:$true] %s19
      %s21 = sshll.u32 [#allocation2], 4
      %s22 = int_to_ptr.vmem [resolvable:$true] %s21
      %24 = dma.hbm_to_vmem [thread:$0]  %s20, 128, %s22, [#allocation3]
    $region5: #{tpu_custom_call.1} parent=1 // pred_fallthru
      _
    // Predicated region
    $region6: #{tpu_custom_call.1} parent=1 // pred_check
      _
    $region7: #{tpu_custom_call.1} parent=1 // pred_check_branch
      %26 = sbr.rel (0) target = $region9
    $region8: #{tpu_custom_call.1} parent=1 // pred_region
      %28 = vsyncadd [#allocation6], 0
      %s30 = sshll.u32 %s1, 4
      %s31 = int_to_ptr.hbm [resolvable:$true] %s30
      %s32 = sshll.u32 [#allocation5], 4
      %s33 = int_to_ptr.vmem [resolvable:$true] %s32
      %35 = dma.hbm_to_vmem [thread:$0]  %s31, 128, %s33, [#allocation6]
    $region9: #{tpu_custom_call.1} parent=1 // pred_fallthru
      _
    // Predicated region
    $region10: #{tpu_custom_call.1} parent=1 // pred_check
      _
    $region11: #{tpu_custom_call.1} parent=1 // pred_check_branch
      %37 = sbr.rel (0) target = $region13
    $region12: #{tpu_custom_call.1} parent=1 // pred_region
      %39 = vsyncadd [#allocation6], 0
      %s40 = sshll.u32 %s2, 4
      %s41 = int_to_ptr.hbm [resolvable:$true] %s40
      %s42 = sshll.u32 [#allocation7], 4
      %s43 = int_to_ptr.vmem [resolvable:$true] %s42
      %48 = dma.hbm_to_vmem [thread:$0]  %s41, 1024, %s43, [#allocation6], 128, 128, 8
    $region13: #{tpu_custom_call.1} parent=1 // pred_fallthru
      _
    // Predicated region
    $region14: #{tpu_custom_call.1} parent=1 // pred_check
      _
    $region15: #{tpu_custom_call.1} parent=1 // pred_check_branch
      %50 = sbr.rel (0) target = $region17
    $region16: #{tpu_custom_call.1} parent=1 // pred_region
      %52 = vsyncadd [#allocation9], 0
      %s53 = sshll.u32 %s3, 4
      %s54 = int_to_ptr.hbm [resolvable:$true] %s53
      %s55 = sshll.u32 [#allocation8], 4
      %s56 = int_to_ptr.vmem [resolvable:$true] %s55
      %61 = dma.hbm_to_vmem [thread:$0]  %s54, 1024, %s56, [#allocation9], 128, 128, 8
    $region17: #{tpu_custom_call.1} parent=1 // pred_fallthru
      _
    // Predicated region
    $region18: #{tpu_custom_call.1} parent=1 // pred_check
      _
    $region19: #{tpu_custom_call.1} parent=1 // pred_check_branch
      %63 = sbr.rel (0) target = $region21
    $region20: #{tpu_custom_call.1} parent=1 // pred_region
      _
    $region21: #{tpu_custom_call.1} parent=1 // pred_fallthru
      _
    // Predicated region
    $region22: #{tpu_custom_call.1} parent=1 // pred_check
      _
    $region23: #{tpu_custom_call.1} parent=1 // pred_check_branch
      %65 = sbr.rel (0) target = $region25
    $region24: #{tpu_custom_call.1} parent=1 // pred_region
      %67 = dma.done [#allocation3], 128
    $region25: #{tpu_custom_call.1} parent=1 // pred_fallthru
      _
    // Predicated region
    $region26: #{tpu_custom_call.1} parent=1 // pred_check
      _
    $region27: #{tpu_custom_call.1} parent=1 // pred_check_branch
      %69 = sbr.rel (0) target = $region29
    $region28: #{tpu_custom_call.1} parent=1 // pred_region
      %71 = dma.done [#allocation6], 128
    $region29: #{tpu_custom_call.1} parent=1 // pred_fallthru
      _
    // Predicated region
    $region30: #{tpu_custom_call.1} parent=1 // pred_check
      _
    $region31: #{tpu_custom_call.1} parent=1 // pred_check_branch
      %73 = sbr.rel (0) target = $region33
    $region32: #{tpu_custom_call.1} parent=1 // pred_region
      %75 = dma.done [#allocation6], 1024
    $region33: #{tpu_custom_call.1} parent=1 // pred_fallthru
      _
    // Predicated region
    $region34: #{tpu_custom_call.1} parent=1 // pred_check
      _
    $region35: #{tpu_custom_call.1} parent=1 // pred_check_branch
      %77 = sbr.rel (0) target = $region37
    $region36: #{tpu_custom_call.1} parent=1 // pred_region
      %79 = dma.done [#allocation9], 1024
    $region37: #{tpu_custom_call.1} parent=1 // pred_fallthru
      _
    %v80 = vld [vmem:[#allocation2] sm:$0xff]
    %v81 = vld [vmem:[#allocation7] sm:$0xff]
    %v82 = vld [vmem:[#allocation7 + $0x8] sm:$0xff]
    %v83 = vld [vmem:[#allocation7 + $0x10] sm:$0xff]
    %v84 = vld [vmem:[#allocation7 + $0x18] sm:$0xff]
    %v85 = vld [vmem:[#allocation7 + $0x20] sm:$0xff]
    %v86 = vld [vmem:[#allocation7 + $0x28] sm:$0xff]
    %v87 = vld [vmem:[#allocation7 + $0x30] sm:$0xff]
    %v88 = vld [vmem:[#allocation7 + $0x38] sm:$0xff]
    %v89 = vld [vmem:[#allocation5] sm:$0xff]
    %v90 = vld [vmem:[#allocation8] sm:$0xff]
    %v91 = vld [vmem:[#allocation8 + $0x8] sm:$0xff]
    %v92 = vld [vmem:[#allocation8 + $0x10] sm:$0xff]
    %v93 = vld [vmem:[#allocation8 + $0x18] sm:$0xff]
    %v94 = vld [vmem:[#allocation8 + $0x20] sm:$0xff]
    %v95 = vld [vmem:[#allocation8 + $0x28] sm:$0xff]
    %v96 = vld [vmem:[#allocation8 + $0x30] sm:$0xff]
    %v97 = vld [vmem:[#allocation8 + $0x38] sm:$0xff]
    %vm98 = vcmask 523264
    %v100 = vsel %vm98, %v89, 0
    %102 = vmatpush.msra.mxu0 0.0
    %103 = vmatpush.msra.mxu0 0.0
    %104 = vmatpush.msra.mxu0 0.0
    %105 = vmatpush.msra.mxu0 0.0
    %106 = vmatpush.msra.mxu0 0.0
    %107 = vmatpush.msra.mxu0 0.0
    %108 = vmatpush.msra.mxu0 0.0
    %109 = vmatpush.msra.mxu0 0.0
    %110 = vmatpush.msra.mxu0 %v97
    %111 = vmatpush.msra.mxu0 %v96
    %112 = vmatpush.msra.mxu0 %v95
    %113 = vmatpush.msra.mxu0 %v94
    %114 = vmatpush.msra.mxu0 %v93
    %115 = vmatpush.msra.mxu0 %v92
    %116 = vmatpush.msra.mxu0 %v91
    %117 = vmatpush.msra.mxu0 %v90
    %118 = vmatmul.f32.gmra.mxu0 %v100
    %v119 = vpop.f32.mrf.mxu0
    %v120 = vadd.f32 0.0, %v119
    %121 = vdwg.mxu0
    %v123 = vsel %vm98, %v80, 0
    %125 = vmatpush.msra.mxu0 0.0
    %126 = vmatpush.msra.mxu0 0.0
    %127 = vmatpush.msra.mxu0 0.0
    %128 = vmatpush.msra.mxu0 0.0
    %129 = vmatpush.msra.mxu0 0.0
    %130 = vmatpush.msra.mxu0 0.0
    %131 = vmatpush.msra.mxu0 0.0
    %132 = vmatpush.msra.mxu0 0.0
    %133 = vmatpush.msra.mxu0 %v88
    %134 = vmatpush.msra.mxu0 %v87
    %135 = vmatpush.msra.mxu0 %v86
    %136 = vmatpush.msra.mxu0 %v85
    %137 = vmatpush.msra.mxu0 %v84
    %138 = vmatpush.msra.mxu0 %v83
    %139 = vmatpush.msra.mxu0 %v82
    %140 = vmatpush.msra.mxu0 %v81
    %141 = vmatmul.f32.gmra.mxu0 %v123
    %v142 = vpop.f32.mrf.mxu0
    %v143 = vadd.f32 %v120, %v142
    %144 = vdwg.mxu0
    %v145 = vld [vmem:[%s4] sm:$0x1]
    %v147 = vperm.slane %v145, 0
    %v149 = vadd.f32 %v143, %v147
    %v150 = vmul.f32 %v149, 0.5
    %v151 = vmul.f32 %v149, 0.70710677
    %v152 = vmul.f32 %v151, %v151
    %v153 = vmin.f32 16.0, %v152
    %v154 = vmul.f32 %v153, 2.1237322e-06
    %v155 = vadd.f32 %v154, 0.00028619796
    %v156 = vmul.f32 %v153, %v155
    %v157 = vadd.f32 %v156, 0.0036580483
    %v158 = vmul.f32 %v153, %v157
    %v159 = vadd.f32 %v158, 0.05243302
    %v160 = vmul.f32 %v153, %v159
    %v161 = vadd.f32 %v160, 0.18741608
    %v162 = vmul.f32 %v153, %v161
    %v163 = vadd.f32 %v162, 1.1283791
    %v164 = vmul.f32 %v151, %v163
    %v165 = vmul.f32 %v153, 3.8918573e-05
    %v166 = vadd.f32 %v165, 0.001143296
    %v167 = vmul.f32 %v153, %v166
    %v168 = vadd.f32 %v167, 0.014752088
    %v169 = vmul.f32 %v153, %v168
    %v170 = vadd.f32 %v169, 0.112945676
    %v171 = vmul.f32 %v153, %v170
    %v172 = vadd.f32 %v171, 0.4994258
    %v173 = vmul.f32 %v153, %v172
    %v174 = vadd.f32 %v173, 1.0
    %v175 = vrcp.pop %v174
    %v176 = vmul.f32 %v174, %v175
    %v177 = vsub.f32 1.0, %v176
    %v178 = vmul.f32 %v175, %v177
    %v179 = vadd.f32 %v175, %v178
    %vm180 = vweird.f32 %v174
    %vm181 = vweird.f32 %v175
    %vm182 = vmor %vm180, %vm181
    %v183 = vsel %vm182, %v175, %v179
    %v184 = vand.u32 2147483647, %v174
    %vm185 = vcmp.eq.f32.partialorder %v184, 8.507059e+37
    %v186 = vand.u32 %v174, 2147483648
    %v187 = vor.u32 1.1754944e-38, %v186
    %v188 = vsel %vm185, %v187, %v183
    %v189 = vmul.f32 %v164, %v188
    %v190 = vmin.f32 %v189, 1.0
    %v191 = vmax.f32 %v190, -1.0
    %v192 = vadd.f32 %v191, 1.0
    %v193 = vmul.f32 %v150, %v192
    %194 = vst [vmem:[#allocation10] sm:$0xff] %v193
    // Predicated region
    $region38: #{tpu_custom_call.1} parent=1 // pred_check
      _
    $region39: #{tpu_custom_call.1} parent=1 // pred_check_branch
      %196 = sbr.rel (0) target = $region41
    $region40: #{tpu_custom_call.1} parent=1 // pred_region
      %198 = vsyncadd [#allocation4], 0
      %s200 = sshll.u32 [#allocation10], 4
      %s201 = int_to_ptr.vmem [resolvable:$true] %s200
      %s202 = sshll.u32 %s5, 4
      %s203 = int_to_ptr.hbm [resolvable:$true] %s202
      %205 = dma.vmem_to_hbm [thread:$0]  %s201, 128, %s203, [#allocation4]
    $region41: #{tpu_custom_call.1} parent=1 // pred_fallthru
      _
    // Predicated region
    $region42: #{tpu_custom_call.1} parent=1 // pred_check
      _
    $region43: #{tpu_custom_call.1} parent=1 // pred_check_branch
      %207 = sbr.rel (0) target = $region45
    $region44: #{tpu_custom_call.1} parent=1 // pred_region
      %209 = dma.done [#allocation4], 128
    $region45: #{tpu_custom_call.1} parent=1 // pred_fallthru
      _
    %210 = vsyncpa [#allocation3], 1
    %211 = vsyncpa [#allocation6], 1
    %212 = vsyncpa [#allocation9], 1
    %213 = vsyncpa [#allocation4], 1

</llo_original>
